<compile_context>
chip_gen: v5e
topology: v5e:2x2
jax: 0.10.0
libtpu: 0.0.40
codegen_flags: <defaults>
</compile_context>

<pallas_src>
import functools

import jax
import jax.numpy as jnp
import numpy as np
from jax.experimental import pallas as pl
from jax.experimental.pallas import tpu as pltpu

F32 = jnp.float32
BF16 = jnp.bfloat16
NEG = -1e30                      # stand-in for -inf (avoids NaN on fully masked rows)


def _default_vmem_limit():
    # Per-generation scoped-VMEM budget: ~half of physical VMEM, capped.
    cap = 128 * 1024 * 1024
    try:
        info = pltpu.get_tpu_info()
        cap = int(getattr(info, "vmem_capacity_bytes", cap))
    except Exception:
        pass
    return int(min(96 * 1024 * 1024, max(32 * 1024 * 1024, cap // 2)))


VMEM_LIMIT = _default_vmem_limit()


def _round_up(x, m):
    return ((x + m - 1) // m) * m


def _pad2d(x, rp, cp):
    r, c = x.shape
    if r == rp and c == cp:
        return x
    return jnp.pad(x, ((0, rp - r), (0, cp - c)))


# ------------------------------ tiled GEMM ---------------------------------

def _matmul_kernel(a_ref, b_ref, bias_ref, o_ref, acc_ref, *, activation):
    @pl.when(pl.program_id(2) == 0)
    def _():
        acc_ref[...] = jnp.zeros_like(acc_ref)

    acc_ref[...] += jnp.dot(a_ref[...], b_ref[...],
                            preferred_element_type=jnp.float32)

    @pl.when(pl.program_id(2) == pl.num_programs(2) - 1)
    def _():
        y = acc_ref[...] + bias_ref[...]
        if activation == "relu":
            y = jnp.maximum(y, 0.0)
        o_ref[...] = y.astype(o_ref.dtype)


def _matmul_ln_kernel(a_ref, b_ref, bias_ref, r_ref, g_ref, be_ref,
                      o_ref, acc_ref, *, n_valid, eps):
    """GEMM with fused epilogue: LayerNorm(residual + (A@B + bias))."""
    @pl.when(pl.program_id(2) == 0)
    def _():
        acc_ref[...] = jnp.zeros_like(acc_ref)

    acc_ref[...] += jnp.dot(a_ref[...], b_ref[...],
                            preferred_element_type=jnp.float32)

    @pl.when(pl.program_id(2) == pl.num_programs(2) - 1)
    def _():
        x = acc_ref[...] + bias_ref[...] + r_ref[...]
        tn = x.shape[-1]
        inv_n = 1.0 / float(n_valid)
        if n_valid < tn:  # mask out lane padding so stats only use real columns
            valid = jax.lax.broadcasted_iota(jnp.int32, x.shape, 1) < n_valid
            xv = jnp.where(valid, x, 0.0)
            mu = jnp.sum(xv, axis=-1, keepdims=True) * inv_n
            d = jnp.where(valid, x - mu, 0.0)
        else:
            mu = jnp.sum(x, axis=-1, keepdims=True) * inv_n
            d = x - mu
        var = jnp.sum(d * d, axis=-1, keepdims=True) * inv_n
        y = (x - mu) * jax.lax.rsqrt(var + eps) * g_ref[...] + be_ref[...]
        o_ref[...] = y.astype(o_ref.dtype)


def pallas_matmul(a, b, bias=None, activation=None, out_dtype=F32,
                  residual=None, ln_gamma=None, ln_beta=None, ln_eps=1e-5):
    """act(A @ B + bias), optionally with a fused LayerNorm(residual + .) epilogue.
    A:(M,K) B:(K,N) bias:(N,).  bf16 inputs, f32 accumulation, K-last reduction
    grid, lane-dense (padded-to-128) N."""
    M, K = a.shape
    K2, N = b.shape
    assert K == K2
    if bias is None:
        bias = jnp.zeros((N,), F32)
    fuse_ln = ln_gamma is not None

    tm = min(512, _round_up(M, 16))
    tn = min(512, _round_up(N, 128))
    tk = min(1024, _round_up(K, 128))
    Mp, Np = _round_up(M, tm), _round_up(N, tn)

    if fuse_ln and Np != tn:
        # Row doesn't fit in a single N tile -> fall back to a separate LN kernel.
        y = pallas_matmul(a, b, bias, activation=None, out_dtype=F32)
        return pallas_add_layernorm(y, residual.astype(F32), ln_gamma, ln_beta, ln_eps)

    # shrink tk if double-buffered A/B tiles + acc would crowd the VMEM budget
    while tk > 128 and (4 * (tm * tk + tk * tn) + 8 * tm * tn) > VMEM_LIMIT // 2:
        tk = max(128, tk // 2)
    Kp = _round_up(K, tk)

    a_p = _pad2d(a.astype(BF16), Mp, Kp)
    b_p = _pad2d(b.astype(BF16), Kp, Np)
    bias_p = _pad2d(bias.astype(F32).reshape(1, N), 1, Np)

    grid = (Mp // tm, Np // tn, Kp // tk)
    out_dt = F32 if fuse_ln else out_dtype
    out_isz = jnp.dtype(out_dt).itemsize
    cost = pl.CostEstimate(
        flops=2 * Mp * Np * Kp, transcendentals=0,
        bytes_accessed=2 * Mp * Kp + 2 * Kp * Np + out_isz * Mp * Np + 4 * Np)

    base_specs = [pl.BlockSpec((tm, tk), lambda i, j, k: (i, k)),
                  pl.BlockSpec((tk, tn), lambda i, j, k: (k, j)),
                  pl.BlockSpec((1, tn), lambda i, j, k: (0, j))]
    common = dict(
        out_shape=jax.ShapeDtypeStruct((Mp, Np), out_dt),
        grid=grid,
        out_specs=pl.BlockSpec((tm, tn), lambda i, j, k: (i, j)),
        scratch_shapes=[pltpu.VMEM((tm, tn), jnp.float32)],
        compiler_params=pltpu.CompilerParams(
            dimension_semantics=("parallel", "parallel", "arbitrary"),
            vmem_limit_bytes=VMEM_LIMIT),
        cost_estimate=cost,
    )

    if fuse_ln:
        r_p = _pad2d(residual.astype(F32), Mp, Np)
        g_p = _pad2d(ln_gamma.astype(F32).reshape(1, N), 1, Np)
        be_p = _pad2d(ln_beta.astype(F32).reshape(1, N), 1, Np)
        out = pl.pallas_call(
            functools.partial(_matmul_ln_kernel, n_valid=N, eps=ln_eps),
            in_specs=base_specs + [pl.BlockSpec((tm, tn), lambda i, j, k: (i, j)),
                                   pl.BlockSpec((1, tn), lambda i, j, k: (0, j)),
                                   pl.BlockSpec((1, tn), lambda i, j, k: (0, j))],
            **common,
        )(a_p, b_p, bias_p, r_p, g_p, be_p)
    else:
        out = pl.pallas_call(
            functools.partial(_matmul_kernel, activation=activation),
            in_specs=base_specs,
            **common,
        )(a_p, b_p, bias_p)
    return out[:M, :N]


# --------------------------- fused attention -------------------------------

def _attn_body(q, k, v, pad_bias, o_ref, heads, scale, causal):
    """q:(Lq,E) k,v:(Lk,E) bf16; pad_bias:(1,Lk) f32 additive or None.
    Heads split/merged in VMEM; output written lane-dense as (1,Lq,E)."""
    Lq, E = q.shape
    Lk = k.shape[0]
    Dh = E // heads

    add = None
    if causal:
        qi = jax.lax.broadcasted_iota(jnp.int32, (Lq, Lk), 0)
        ki = jax.lax.broadcasted_iota(jnp.int32, (Lq, Lk), 1)
        add = jnp.where(ki > qi, NEG, 0.0).astype(jnp.float32)
    if pad_bias is not None:
        add = pad_bias if add is None else add + pad_bias

    dn_qk = (((1,), (1,)), ((), ()))   # (Lq,Dh) x (Lk,Dh) -> (Lq,Lk)
    dn_pv = (((1,), (0,)), ((), ()))   # (Lq,Lk) x (Lk,Dh) -> (Lq,Dh)
    outs = []
    for h in range(heads):             # static unroll; heads is small
        lo = h * Dh
        qh = q[:, lo:lo + Dh] * scale  # scale folded into q (Lq*Dh elems)
        kh = k[:, lo:lo + Dh]
        vh = v[:, lo:lo + Dh]
        s = jax.lax.dot_general(qh, kh, dn_qk, preferred_element_type=jnp.float32)
        if add is not None:
            s = s + add
        mx = jnp.max(s, axis=-1, keepdims=True)
        p = jnp.exp(s - mx)
        denom = jnp.sum(p, axis=-1, keepdims=True)
        p = p * pl.reciprocal(denom, approx=True)
        outs.append(jax.lax.dot_general(p.astype(BF16), vh, dn_pv,
                                        preferred_element_type=jnp.float32))
    o = jnp.concatenate(outs, axis=-1)             # (Lq, E) — lane-dense merge
    o_ref[...] = o[None].astype(o_ref.dtype)


def _attn_kernel(q_ref, k_ref, v_ref, o_ref, *, heads, scale, causal):
    _attn_body(q_ref[0], k_ref[0], v_ref[0], None, o_ref, heads, scale, causal)


def _attn_kernel_pad(q_ref, k_ref, v_ref, pad_ref, o_ref, *, heads, scale, causal):
    _attn_body(q_ref[0], k_ref[0], v_ref[0], pad_ref[0], o_ref, heads, scale, causal)


def pallas_attention(q, k, v, heads, causal=False, key_pad_bias=None):
    """q:(B,Lq,E), k,v:(B,Lk,E) bf16; key_pad_bias:(B,1,Lk) additive f32 or None.
    One grid step per batch element; all heads of that batch handled in-kernel."""
    # TODO(synk): with B==1 a single grid step cannot be sharded across the two
    # v7x TensorCores; acceptable at these sizes.
    B, Lq, E = q.shape
    Lk = k.shape[1]
    assert E % heads == 0
    scale = 1.0 / float(np.sqrt(E // heads))

    in_specs = [pl.BlockSpec((1, Lq, E), lambda i: (i, 0, 0)),
                pl.BlockSpec((1, Lk, E), lambda i: (i, 0, 0)),
                pl.BlockSpec((1, Lk, E), lambda i: (i, 0, 0))]
    args = [q.astype(BF16), k.astype(BF16), v.astype(BF16)]
    if key_pad_bias is not None:
        kern = functools.partial(_attn_kernel_pad, heads=heads, scale=scale, causal=causal)
        in_specs.append(pl.BlockSpec((1, 1, Lk), lambda i: (i, 0, 0)))
        args.append(key_pad_bias.astype(F32))
    else:
        kern = functools.partial(_attn_kernel, heads=heads, scale=scale, causal=causal)

    return pl.pallas_call(
        kern,
        out_shape=jax.ShapeDtypeStruct((B, Lq, E), BF16),
        grid=(B,),
        in_specs=in_specs,
        out_specs=pl.BlockSpec((1, Lq, E), lambda i: (i, 0, 0)),
        compiler_params=pltpu.CompilerParams(
            dimension_semantics=("parallel",),
            vmem_limit_bytes=VMEM_LIMIT),
    )(*args)


# --------------------- row-norm / epilogue kernels --------------------------

def _add_ln_kernel(x_ref, r_ref, g_ref, b_ref, o_ref, *, eps):
    x = x_ref[...] + r_ref[...]
    mu = jnp.mean(x, axis=-1, keepdims=True)
    var = jnp.mean(jnp.square(x - mu), axis=-1, keepdims=True)
    o_ref[...] = (x - mu) * jax.lax.rsqrt(var + eps) * g_ref[...] + b_ref[...]


def pallas_add_layernorm(x2d, r2d, gamma, beta, eps=1e-5):
    """LayerNorm(x + r) over last axis (fallback when LN can't fuse into the GEMM)."""
    R, S = x2d.shape
    tr = min(256, _round_up(R, 8))
    Rp = _round_up(R, tr)
    out = pl.pallas_call(
        functools.partial(_add_ln_kernel, eps=eps),
        out_shape=jax.ShapeDtypeStruct((Rp, S), F32),
        grid=(Rp // tr,),
        in_specs=[pl.BlockSpec((tr, S), lambda i: (i, 0)),
                  pl.BlockSpec((tr, S), lambda i: (i, 0)),
                  pl.BlockSpec((1, S), lambda i: (0, 0)),
                  pl.BlockSpec((1, S), lambda i: (0, 0))],
        out_specs=pl.BlockSpec((tr, S), lambda i: (i, 0)),
        compiler_params=pltpu.CompilerParams(
            dimension_semantics=("parallel",), vmem_limit_bytes=VMEM_LIMIT),
    )(_pad2d(x2d.astype(F32), Rp, S), _pad2d(r2d.astype(F32), Rp, S),
      gamma.astype(F32).reshape(1, S), beta.astype(F32).reshape(1, S))
    return out[:R]


def _in_kernel(x_ref, g_ref, b_ref, o_ref, *, eps, lrelu):
    x = x_ref[...]
    mu = jnp.mean(x, axis=-1, keepdims=True)
    var = jnp.mean(jnp.square(x - mu), axis=-1, keepdims=True)
    y = (x - mu) * jax.lax.rsqrt(var + eps) * g_ref[...] + b_ref[...]
    if lrelu:
        y = jnp.where(y >= 0, y, 0.01 * y)
    o_ref[...] = y


def pallas_instance_norm(x, gamma, beta, lrelu, eps=1e-5):
    """InstanceNorm3d(affine=True) (+ optional fused LeakyReLU).
    x:(B,C,D,H,W), per-(B,C) stats over D*H*W, row-tiled."""
    B, C, D, H, W = x.shape
    R, S = B * C, D * H * W
    tr = min(256, _round_up(R, 8))
    Rp = _round_up(R, tr)
    out = pl.pallas_call(
        functools.partial(_in_kernel, eps=eps, lrelu=lrelu),
        out_shape=jax.ShapeDtypeStruct((Rp, S), F32),
        grid=(Rp // tr,),
        in_specs=[pl.BlockSpec((tr, S), lambda i: (i, 0)),
                  pl.BlockSpec((tr, 1), lambda i: (i, 0)),
                  pl.BlockSpec((tr, 1), lambda i: (i, 0))],
        out_specs=pl.BlockSpec((tr, S), lambda i: (i, 0)),
        compiler_params=pltpu.CompilerParams(
            dimension_semantics=("parallel",), vmem_limit_bytes=VMEM_LIMIT),
    )(_pad2d(x.reshape(R, S).astype(F32), Rp, S),
      _pad2d(jnp.tile(gamma.astype(F32), B).reshape(R, 1), Rp, 1),
      _pad2d(jnp.tile(beta.astype(F32), B).reshape(R, 1), Rp, 1))
    return out[:R].reshape(B, C, D, H, W)


def _dual_in_kernel(a_ref, b_ref, ga_ref, ba_ref, gb_ref, bb_ref, o_ref, *, eps):
    def norm(x, g, b):
        mu = jnp.mean(x, axis=-1, keepdims=True)
        var = jnp.mean(jnp.square(x - mu), axis=-1, keepdims=True)
        return (x - mu) * jax.lax.rsqrt(var + eps) * g + b
    y = (norm(a_ref[...], ga_ref[...], ba_ref[...])
         + norm(b_ref[...], gb_ref[...], bb_ref[...]))
    o_ref[...] = jnp.where(y >= 0, y, 0.01 * y)


def pallas_dual_in_add_lrelu(a, b, ga, ba, gb, bb, eps=1e-5):
    """LeakyReLU( IN(a)*ga+ba + IN(b)*gb+bb ) fused in one kernel (residual merge)."""
    B, C, D, H, W = a.shape
    R, S = B * C, D * H * W
    tr = min(256, _round_up(R, 8))
    Rp = _round_up(R, tr)

    def prep_x(x):
        return _pad2d(x.reshape(R, S).astype(F32), Rp, S)

    def prep_p(p):
        return _pad2d(jnp.tile(p.astype(F32), B).reshape(R, 1), Rp, 1)

    out = pl.pallas_call(
        functools.partial(_dual_in_kernel, eps=eps),
        out_shape=jax.ShapeDtypeStruct((Rp, S), F32),
        grid=(Rp // tr,),
        in_specs=[pl.BlockSpec((tr, S), lambda i: (i, 0)),
                  pl.BlockSpec((tr, S), lambda i: (i, 0)),
                  pl.BlockSpec((tr, 1), lambda i: (i, 0)),
                  pl.BlockSpec((tr, 1), lambda i: (i, 0)),
                  pl.BlockSpec((tr, 1), lambda i: (i, 0)),
                  pl.BlockSpec((tr, 1), lambda i: (i, 0))],
        out_specs=pl.BlockSpec((tr, S), lambda i: (i, 0)),
        compiler_params=pltpu.CompilerParams(
            dimension_semantics=("parallel",), vmem_limit_bytes=VMEM_LIMIT),
    )(prep_x(a), prep_x(b), prep_p(ga), prep_p(ba), prep_p(gb), prep_p(bb))
    return out[:R].reshape(B, C, D, H, W)


# ------------------------- conv / residual blocks --------------------------

def conv3d(x, w, b, stride=(1, 1, 1), padding=(0, 0, 0)):
    """x:(B,Cin,D,H,W)  w:(Cout,Cin,kd,kh,kw)  b:(Cout,).
    Spatial conv via XLA (no materialized 27x im2col)."""
    # TODO(synk): replace with a Pallas GEMM that DMA-gathers the patch window
    # directly (scalar-prefetch index_map) to keep the conv front-end in Pallas.
    out = jax.lax.conv_general_dilated(
        x.astype(F32), w.astype(F32),
        window_strides=stride,
        padding=[(p, p) for p in padding],
        dimension_numbers=('NCDHW', 'OIDHW', 'NCDHW'))
    return out + b.astype(F32).reshape(1, -1, 1, 1, 1)


def residual_block(x, p, stride, skip):
    k1 = p['w1'].shape[2:]
    pad1 = tuple((k - 1) // 2 for k in k1)
    out = conv3d(x, p['w1'], p['b1'], stride, pad1)
    out = pallas_instance_norm(out, p['g1'], p['be1'], lrelu=True)
    out = conv3d(out, p['w2'], p['b2'], (1, 1, 1), (1, 1, 1))
    if skip:
        sc = conv3d(x, p['ws'], p['bs'], stride, (0, 0, 0))
        # IN(out) + IN(shortcut) + LeakyReLU fused in one kernel
        return pallas_dual_in_add_lrelu(out, sc, p['g2'], p['be2'], p['gs'], p['bes'])
    # skip=False:  lrelu(IN(out))
    return pallas_instance_norm(out, p['g2'], p['be2'], lrelu=True)


# ---------------------------- transformer parts ----------------------------

def multihead_attention(q_in, kv_in, p, heads, residual, ln_g, ln_b,
                        causal=False, key_pad=None):
    """PyTorch-style MHA + out-projection, with residual-add + LayerNorm fused
    into the out-proj GEMM epilogue.  q_in/kv_in: (B, L, E) f32."""
    B, Lq, E = q_in.shape
    Lk = kv_in.shape[1]
    in_w, in_b = p['in_w'], p['in_b']

    if q_in is kv_in:
        # fused QKV projection: one GEMM, bf16 output feeds the attention kernel
        qkv = pallas_matmul(q_in.reshape(B * Lq, E), in_w.T, in_b, out_dtype=BF16)
        q = qkv[:, :E].reshape(B, Lq, E)
        k = qkv[:, E:2 * E].reshape(B, Lk, E)
        v = qkv[:, 2 * E:].reshape(B, Lk, E)
    else:
        q = pallas_matmul(q_in.reshape(B * Lq, E), in_w[:E].T, in_b[:E],
                          out_dtype=BF16).reshape(B, Lq, E)
        kv = pallas_matmul(kv_in.reshape(B * Lk, E), in_w[E:].T, in_b[E:],
                           out_dtype=BF16)
        k = kv[:, :E].reshape(B, Lk, E)
        v = kv[:, E:].reshape(B, Lk, E)

    pad_bias = None
    if key_pad is not None:
        pad_bias = jnp.where(key_pad, NEG, 0.0).astype(F32).reshape(B, 1, Lk)

    o = pallas_attention(q, k, v, heads, causal=causal, key_pad_bias=pad_bias)
    # out-proj GEMM with fused  LayerNorm(residual + out_proj(attn))
    out = pallas_matmul(o.reshape(B * Lq, E), p['out_w'].T, p['out_b'],
                        residual=residual.reshape(B * Lq, E),
                        ln_gamma=ln_g, ln_beta=ln_b)
    return out.reshape(B, Lq, E)


def encoder_layer(x, p, heads):
    # post-norm TransformerEncoderLayer (relu FFN, eval mode -> no dropout)
    B, L, E = x.shape
    x = multihead_attention(x, x, p['attn'], heads,
                            residual=x, ln_g=p['ln1_g'], ln_b=p['ln1_b'])
    h = pallas_matmul(x.reshape(B * L, E), p['w1'].T, p['b1'],
                      activation="relu", out_dtype=BF16)
    x = pallas_matmul(h, p['w2'].T, p['b2'],
                      residual=x.reshape(B * L, E),
                      ln_gamma=p['ln2_g'], ln_beta=p['ln2_b']).reshape(B, L, E)
    return x


def decoder_layer(x, mem, p, heads, tgt_pad):
    B, L, E = x.shape
    x = multihead_attention(x, x, p['self_attn'], heads,
                            residual=x, ln_g=p['ln1_g'], ln_b=p['ln1_b'],
                            causal=True, key_pad=tgt_pad)
    x = multihead_attention(x, mem, p['cross_attn'], heads,
                            residual=x, ln_g=p['ln2_g'], ln_b=p['ln2_b'])
    h = pallas_matmul(x.reshape(B * L, E), p['w1'].T, p['b1'],
                      activation="relu", out_dtype=BF16)
    x = pallas_matmul(h, p['w2'].T, p['b2'],
                      residual=x.reshape(B * L, E),
                      ln_gamma=p['ln3_g'], ln_beta=p['ln3_b']).reshape(B, L, E)
    return x


# ---------------------- positional embeddings & masks ----------------------

def posemb_sincos_3d(dim, d, h, w, temperature=10000.0):
    # Faithful to reference: meshgrid over (arange(d), arange(w), arange(h)), indexing='ij'.
    z, y, x = jnp.meshgrid(jnp.arange(d, dtype=F32),
                           jnp.arange(w, dtype=F32),
                           jnp.arange(h, dtype=F32), indexing='ij')
    fd = dim // 6
    omega = jnp.arange(fd, dtype=F32) / (fd - 1)
    omega = 1.0 / temperature ** omega
    z = z.flatten()[:, None] * omega[None, :]
    y = y.flatten()[:, None] * omega[None, :]
    x = x.flatten()[:, None] * omega[None, :]
    pe = jnp.concatenate([jnp.sin(x), jnp.cos(x), jnp.sin(y), jnp.cos(y),
                          jnp.sin(z), jnp.cos(z)], axis=1)
    pe = jnp.pad(pe, ((0, 0), (0, dim - fd * 6)))
    return pe


def posemb_sincos_1d(n, dim, temperature=10000.0):
    pos = jnp.arange(n, dtype=F32)
    omega = jnp.arange(dim // 2, dtype=F32) / (dim // 2 - 1)
    omega = 1.0 / temperature ** omega
    ang = pos[:, None] * omega[None, :]
    return jnp.concatenate([jnp.sin(ang), jnp.cos(ang)], axis=1)


def create_mask(tgt_tokens, pad_idx):
    # TODO(synk): create_mask is not defined in the reference source; standard
    # causal + key-padding semantics are used.  The causal part is generated
    # inside the attention kernel; only the key-padding boolean is returned.
    return (tgt_tokens == pad_idx)


# --------------------------------- forward ---------------------------------

def neu2seq_forward(params, img, tgt_tokens, cfg):
    heads = cfg['heads']
    x = residual_block(img, params['pre'], (1, 1, 1), skip=False)
    for p_down, stride in zip(params['downs'], cfg['stride_list']):
        x = residual_block(x, p_down, tuple(stride), skip=True)

    # input_proj (1x1x1 conv) as a Pallas GEMM producing the (B, L, dim) sequence
    # directly (equivalent to conv -> flatten(2) -> permute(0,2,1)).
    B, C, d, h, w = x.shape
    dim = params['proj_w'].shape[0]
    feat = x.transpose(0, 2, 3, 4, 1).reshape(B * d * h * w, C)
    src = pallas_matmul(feat, params['proj_w'].reshape(dim, C).T,
                        params['proj_b']).reshape(B, d * h * w, dim)
    pos = posemb_sincos_3d(dim, d, h, w)[None]               # (1, d*w*h, dim)
    src = src + pos

    tgt_pad = create_mask(tgt_tokens, cfg['pad_idx'])
    emb = params['embedding'][tgt_tokens]                    # (B, L, dim)
    seq_pos = posemb_sincos_1d(emb.shape[1], dim)[None]
    tgt = emb + seq_pos

    mem = src
    for lp in params['enc']:
        mem = encoder_layer(mem, lp, heads)
    hs = tgt
    for lp in params['dec']:
        hs = decoder_layer(hs, mem, lp, heads, tgt_pad)

    Bv, L, E = hs.shape
    out = pallas_matmul(hs.reshape(Bv * L, E), params['head_w'].T, params['head_b'])
    return out.reshape(Bv, L, cfg['vocab_size'])


# --------------------------- parameter initialization -----------------------

def _randn(key, shape, scale=0.05):
    return (scale * jax.random.normal(key, shape)).astype(F32)


def init_resblock(key, cin, cout, kernel):
    ks = jax.random.split(key, 3)
    kd, kh, kw = kernel
    return dict(
        w1=_randn(ks[0], (cout, cin, kd, kh, kw)), b1=jnp.zeros((cout,), F32),
        g1=jnp.ones((cout,), F32), be1=jnp.zeros((cout,), F32),
        w2=_randn(ks[1], (cout, cout, 3, 3, 3)), b2=jnp.zeros((cout,), F32),
        g2=jnp.ones((cout,), F32), be2=jnp.zeros((cout,), F32),
        ws=_randn(ks[2], (cout, cin, 1, 1, 1)), bs=jnp.zeros((cout,), F32),
        gs=jnp.ones((cout,), F32), bes=jnp.zeros((cout,), F32),
    )


def init_mha(key, dim):
    k1, k2 = jax.random.split(key)
    return dict(in_w=_randn(k1, (3 * dim, dim)), in_b=jnp.zeros((3 * dim,), F32),
                out_w=_randn(k2, (dim, dim)), out_b=jnp.zeros((dim,), F32))


def init_enc_layer(key, dim, ff):
    ks = jax.random.split(key, 3)
    return dict(attn=init_mha(ks[0], dim),
                w1=_randn(ks[1], (ff, dim)), b1=jnp.zeros((ff,), F32),
                w2=_randn(ks[2], (dim, ff)), b2=jnp.zeros((dim,), F32),
                ln1_g=jnp.ones((dim,), F32), ln1_b=jnp.zeros((dim,), F32),
                ln2_g=jnp.ones((dim,), F32), ln2_b=jnp.zeros((dim,), F32))


def init_dec_layer(key, dim, ff):
    ks = jax.random.split(key, 4)
    return dict(self_attn=init_mha(ks[0], dim), cross_attn=init_mha(ks[1], dim),
                w1=_randn(ks[2], (ff, dim)), b1=jnp.zeros((ff,), F32),
                w2=_randn(ks[3], (dim, ff)), b2=jnp.zeros((dim,), F32),
                ln1_g=jnp.ones((dim,), F32), ln1_b=jnp.zeros((dim,), F32),
                ln2_g=jnp.ones((dim,), F32), ln2_b=jnp.zeros((dim,), F32),
                ln3_g=jnp.ones((dim,), F32), ln3_b=jnp.zeros((dim,), F32))


def init_params(key, cfg):
    keys = jax.random.split(key, 8)
    params = {}
    params['pre'] = init_resblock(keys[0], cfg['in_channels'], cfg['base_channels'], (3, 3, 3))
    downs = []
    cin, cout = cfg['base_channels'], 2 * cfg['base_channels']
    dk = jax.random.split(keys[1], max(1, len(cfg['down_kernel_list'])))
    for i, kern in enumerate(cfg['down_kernel_list']):
        downs.append(init_resblock(dk[i], cin, cout, tuple(kern)))
        cin, cout = cout, cout * 2
    params['downs'] = downs
    proj_in = cout // 2                      # matches `out_channels = out_channels/2`
    dim = cfg['dim']
    params['proj_w'] = _randn(keys[2], (dim, proj_in, 1, 1, 1))
    params['proj_b'] = jnp.zeros((dim,), F32)
    params['embedding'] = _randn(keys[3], (cfg['vocab_size'], dim), scale=0.1)
    ek = jax.random.split(keys[4], cfg['encoder_depth'])
    params['enc'] = [init_enc_layer(ek[i], dim, cfg['ff']) for i in range(cfg['encoder_depth'])]
    dck = jax.random.split(keys[5], cfg['decoder_depth'])
    params['dec'] = [init_dec_layer(dck[i], dim, cfg['ff']) for i in range(cfg['decoder_depth'])]
    params['head_w'] = _randn(keys[6], (cfg['vocab_size'], dim))
    params['head_b'] = jnp.zeros((cfg['vocab_size'],), F32)
    return params


# ----------------------------------- main -----------------------------------

if __name__ == "__main__":
    cfg = dict(in_channels=1, base_channels=4,
               down_kernel_list=[(3, 3, 3)], stride_list=[(2, 2, 2)],
               dim=32, encoder_depth=1, decoder_depth=1, heads=4,
               dropout=0.0, vocab_size=16, pad_idx=0,
               ff=2048)  # PyTorch TransformerEncoder/DecoderLayer default dim_feedforward

    key = jax.random.PRNGKey(0)
    kp, ki = jax.random.split(key)
    params = init_params(kp, cfg)

    img = jax.random.normal(ki, (1, cfg['in_channels'], 8, 8, 8), F32)
    # token ids in [1, vocab); trailing pad token exercises the key-padding mask
    tgt = jnp.array([[1, 3, 5, 7, 2, cfg['pad_idx']]], dtype=jnp.int32)

    out = neu2seq_forward(params, img, tgt, cfg)
    out = jax.block_until_ready(out)
    assert out.shape == (1, tgt.shape[1], cfg['vocab_size'])
    assert bool(jnp.all(jnp.isfinite(out)))
    print("KERNEL_OK")
</pallas_src>

<mosaic_0001>
module attributes {stable_mosaic.version = 11 : i64} {
  func.func @_in_kernel(%arg0: i32, %arg1: memref<8x512xf32, #tpu.memory_space<vmem>>, %arg2: memref<8x1xf32, #tpu.memory_space<vmem>>, %arg3: memref<8x1xf32, #tpu.memory_space<vmem>>, %arg4: memref<8x512xf32, #tpu.memory_space<vmem>>) attributes {dimension_semantics = [#tpu.dimension_semantics<parallel>], iteration_bounds = array<i64: 1>, scalar_prefetch = 0 : i64, scratch_operands = 0 : i64, tpu.core_type = #tpu.core_type<tc>, window_params = [{transform_indices = @transform_0, window_bounds = array<i64: 8, 512>}, {transform_indices = @transform_1, window_bounds = array<i64: 8, 1>}, {transform_indices = @transform_2, window_bounds = array<i64: 8, 1>}, {transform_indices = @transform_3, window_bounds = array<i64: 8, 512>}]} {
    %c0 = arith.constant 0 : index
    %c0_0 = arith.constant 0 : index
    %0 = vector.load %arg1[%c0, %c0_0] : memref<8x512xf32, #tpu.memory_space<vmem>>, vector<8x512xf32>
    %cst = arith.constant dense<0.000000e+00> : vector<8xf32>
    %1 = vector.multi_reduction <add>, %0, %cst [1] : vector<8x512xf32> to vector<8xf32>
    %2 = vector.shape_cast %1 : vector<8xf32> to vector<8x1xf32>
    %cst_1 = arith.constant 5.120000e+02 : f32
    %3 = vector.broadcast %cst_1 : f32 to vector<8x1xf32>
    %4 = arith.divf %2, %3 : vector<8x1xf32>
    %5 = vector.broadcast %4 : vector<8x1xf32> to vector<8x512xf32>
    %6 = arith.subf %0, %5 : vector<8x512xf32>
    %7 = arith.mulf %6, %6 : vector<8x512xf32>
    %cst_2 = arith.constant dense<0.000000e+00> : vector<8xf32>
    %8 = vector.multi_reduction <add>, %7, %cst_2 [1] : vector<8x512xf32> to vector<8xf32>
    %9 = vector.shape_cast %8 : vector<8xf32> to vector<8x1xf32>
    %cst_3 = arith.constant 5.120000e+02 : f32
    %10 = vector.broadcast %cst_3 : f32 to vector<8x1xf32>
    %11 = arith.divf %9, %10 : vector<8x1xf32>
    %12 = vector.broadcast %4 : vector<8x1xf32> to vector<8x512xf32>
    %13 = arith.subf %0, %12 : vector<8x512xf32>
    %cst_4 = arith.constant 9.99999974E-6 : f32
    %14 = vector.broadcast %cst_4 : f32 to vector<8x1xf32>
    %15 = arith.addf %11, %14 : vector<8x1xf32>
    %16 = math.rsqrt %15 : vector<8x1xf32>
    %17 = vector.broadcast %16 : vector<8x1xf32> to vector<8x512xf32>
    %18 = arith.mulf %13, %17 : vector<8x512xf32>
    %c0_5 = arith.constant 0 : index
    %c0_6 = arith.constant 0 : index
    %19 = vector.load %arg2[%c0_5, %c0_6] : memref<8x1xf32, #tpu.memory_space<vmem>>, vector<8x1xf32>
    %20 = vector.broadcast %19 : vector<8x1xf32> to vector<8x512xf32>
    %21 = arith.mulf %18, %20 : vector<8x512xf32>
    %c0_7 = arith.constant 0 : index
    %c0_8 = arith.constant 0 : index
    %22 = vector.load %arg3[%c0_7, %c0_8] : memref<8x1xf32, #tpu.memory_space<vmem>>, vector<8x1xf32>
    %23 = vector.broadcast %22 : vector<8x1xf32> to vector<8x512xf32>
    %24 = arith.addf %21, %23 : vector<8x512xf32>
    %cst_9 = arith.constant 0.000000e+00 : f32
    %25 = vector.broadcast %cst_9 : f32 to vector<8x512xf32>
    %26 = arith.cmpf oge, %24, %25 : vector<8x512xf32>
    %cst_10 = arith.constant 0.00999999977 : f32
    %27 = vector.broadcast %cst_10 : f32 to vector<8x512xf32>
    %28 = arith.mulf %27, %24 : vector<8x512xf32>
    %29 = arith.select %26, %24, %28 : vector<8x512xi1>, vector<8x512xf32>
    %c0_11 = arith.constant 0 : index
    %c0_12 = arith.constant 0 : index
    %30 = vector.load %arg4[%c0_11, %c0_12] : memref<8x512xf32, #tpu.memory_space<vmem>>, vector<8x512xf32>
    tpu.vector_store %arg4[%c0_11, %c0_12], %29 {strides = array<i32>} : memref<8x512xf32, #tpu.memory_space<vmem>>, vector<8x512xf32>,
    return
  }
  func.func @transform_0(%arg0: i32) -> (i32, i32) {
    %c0_i32 = arith.constant 0 : i32
    %c0_i32_0 = arith.constant 0 : i32
    return %arg0, %c0_i32 : i32, i32
  }
  func.func @transform_1(%arg0: i32) -> (i32, i32) {
    %c0_i32 = arith.constant 0 : i32
    %c0_i32_0 = arith.constant 0 : i32
    return %arg0, %c0_i32 : i32, i32
  }
  func.func @transform_2(%arg0: i32) -> (i32, i32) {
    %c0_i32 = arith.constant 0 : i32
    %c0_i32_0 = arith.constant 0 : i32
    return %arg0, %c0_i32 : i32, i32
  }
  func.func @transform_3(%arg0: i32) -> (i32, i32) {
    %c0_i32 = arith.constant 0 : i32
    %c0_i32_0 = arith.constant 0 : i32
    return %arg0, %c0_i32 : i32, i32
  }
}

</mosaic_0001>

<llo_original>
// kernel: tpu_custom_call.1
$region0: #{tpu_custom_call.1}
  #allocation0 [shape = 'u32[]', space=smem, size = 0x4, offset = 0x4, fixed_abs, tag = 'smem constant byte address 0x4 - core index']
  #allocation1 [shape = 'u32[72,128]{1,0:T(1,128)}', space=vmem, size = 0x9000, scoped, tag = 'internal scratch']
  %s0 = inlined_call_operand.hbm [shape: f32[8,512], index: 0, kind: input, shape index: {}]
  %s1 = inlined_call_operand.vmem [shape: f32[8,1], index: 1, kind: input, shape index: {}]
  %s2 = inlined_call_operand.vmem [shape: f32[8,1], index: 2, kind: input, shape index: {}]
  %s3 = inlined_call_operand.hbm [shape: f32[8,512], index: 3, kind: output, shape index: {}]
  %s4 = sld [smem:[#allocation0]]
  $region26: #{tpu_custom_call.1} parent=0
    _
  %s6 = ssub.s32 1, %s4
  %s7 = scalar_select 0, %s6, %s4
  $region1: #{tpu_custom_call.1} parent=0
    #allocation2 [shape = 'u8[16384]{0}', space=vmem, size = 0x4000, scoped, tag = 'input window, operand 0, single buffered']
    #allocation3 [shape = 's32[1]{0}', space=sflag, size = 0x4, scoped, tag = 'scoped memory for tpu_custom_call.1']
    #allocation4 [shape = 's32[1]{0}', space=sflag, size = 0x4, scoped, tag = 'scoped memory for tpu_custom_call.1']
    #allocation5 [shape = 'u8[16384]{0}', space=vmem, size = 0x4000, scoped, tag = 'output window, operand 0, single buffered']
    %8 = vsyncpa [#allocation3], 0
    %9 = vsyncpa [#allocation4], 0
    // Predicated region
    $region2: #{tpu_custom_call.1} parent=1 // pred_check
      _
    $region3: #{tpu_custom_call.1} parent=1 // pred_check_branch
      %11 = sbr.rel (0) target = $region5
    $region4: #{tpu_custom_call.1} parent=1 // pred_region
      %13 = vsyncadd [#allocation3], 0
      %s15 = sshll.u32 %s0, 4
      %s16 = int_to_ptr.hbm [resolvable:$true] %s15
      %s17 = sshll.u32 [#allocation2], 4
      %s18 = int_to_ptr.vmem [resolvable:$true] %s17
      %20 = dma.hbm_to_vmem [thread:$0]  %s16, 512, %s18, [#allocation3]
    $region5: #{tpu_custom_call.1} parent=1 // pred_fallthru
      _
    // Predicated region
    $region6: #{tpu_custom_call.1} parent=1 // pred_check
      _
    $region7: #{tpu_custom_call.1} parent=1 // pred_check_branch
      %22 = sbr.rel (0) target = $region9
    $region8: #{tpu_custom_call.1} parent=1 // pred_region
      _
    $region9: #{tpu_custom_call.1} parent=1 // pred_fallthru
      _
    // Predicated region
    $region10: #{tpu_custom_call.1} parent=1 // pred_check
      _
    $region11: #{tpu_custom_call.1} parent=1 // pred_check_branch
      %24 = sbr.rel (0) target = $region13
    $region12: #{tpu_custom_call.1} parent=1 // pred_region
      _
    $region13: #{tpu_custom_call.1} parent=1 // pred_fallthru
      _
    // Predicated region
    $region14: #{tpu_custom_call.1} parent=1 // pred_check
      _
    $region15: #{tpu_custom_call.1} parent=1 // pred_check_branch
      %26 = sbr.rel (0) target = $region17
    $region16: #{tpu_custom_call.1} parent=1 // pred_region
      %28 = dma.done [#allocation3], 512
    $region17: #{tpu_custom_call.1} parent=1 // pred_fallthru
      _
    %v29 = vld [vmem:[#allocation2] sm:$0xff]
    %v30 = vld [vmem:[#allocation2 + $0x8] sm:$0xff]
    %v31 = vld [vmem:[#allocation2 + $0x10] sm:$0xff]
    %v32 = vld [vmem:[#allocation2 + $0x18] sm:$0xff]
    %v33 = vadd.f32 %v29, %v30
    %v34 = vadd.f32 %v33, %v31
    %v35 = vadd.f32 %v34, %v32
    %36 = vadd.xlane.f32.xlu0 %v35
    %v37 = vpop.xlane.xlu0 %36
    %v38 = vrcp.pop 512.0
    %v39 = vmul.f32 512.0, %v38
    %v40 = vsub.f32 1.0, %v39
    %v41 = vmul.f32 %v38, %v40
    %v42 = vadd.f32 %v38, %v41
    %vm43 = vweird.f32 %v38
    %v44 = vsel %vm43, %v38, %v42
    %v45 = vmul.f32 %v37, %v44
    %v46 = vsub.f32 %v29, %v45
    %v47 = vsub.f32 %v30, %v45
    %v48 = vsub.f32 %v31, %v45
    %v49 = vsub.f32 %v32, %v45
    %v50 = vmul.f32 %v46, %v46
    %v51 = vmul.f32 %v47, %v47
    %v52 = vmul.f32 %v48, %v48
    %v53 = vmul.f32 %v49, %v49
    %v54 = vadd.f32 %v50, %v51
    %v55 = vadd.f32 %v54, %v52
    %v56 = vadd.f32 %v55, %v53
    %57 = vadd.xlane.f32.xlu0 %v56
    %v58 = vpop.xlane.xlu0 %57
    %v59 = vmul.f32 %v58, %v44
    %v60 = vadd.f32 %v59, 1e-05
    %v61 = vrsqrt.pop %v60
    %v62 = vmul.f32 %v61, %v60
    %v63 = vmul.f32 %v62, %v61
    %v64 = vmul.f32 0.5, %v63
    %v65 = vsub.f32 1.5, %v64
    %v66 = vmul.f32 %v61, %v65
    %vm67 = vweird.f32 %v60
    %vm68 = vweird.f32 %v61
    %vm69 = vmor %vm67, %vm68
    %v70 = vsel %vm69, %v61, %v66
    %v71 = vmul.f32 %v46, %v70
    %v72 = vmul.f32 %v47, %v70
    %v73 = vmul.f32 %v48, %v70
    %v74 = vmul.f32 %v49, %v70
    %v75 = vld [vmem:[%s1] sm:$0xff]
    %77 = vset.pattern.permute.xlu0 0
    %78 = vperm.xlu0 %77, %v75
    %v79 = vpop.permute.xlu0 %78
    %v81 = vmul.f32 %v71, %v79
    %v82 = vmul.f32 %v72, %v79
    %v83 = vmul.f32 %v73, %v79
    %v84 = vmul.f32 %v74, %v79
    %v85 = vld [vmem:[%s2] sm:$0xff]
    %87 = vset.pattern.permute.xlu0 0
    %88 = vperm.xlu0 %87, %v85
    %v89 = vpop.permute.xlu0 %88
    %v91 = vadd.f32 %v81, %v89
    %v92 = vadd.f32 %v82, %v89
    %v93 = vadd.f32 %v83, %v89
    %v94 = vadd.f32 %v84, %v89
    %vm95 = vcmp.ge.f32.partialorder %v91, 0.0
    %vm96 = vcmp.ge.f32.partialorder %v92, 0.0
    %vm97 = vcmp.ge.f32.partialorder %v93, 0.0
    %vm98 = vcmp.ge.f32.partialorder %v94, 0.0
    %v99 = vmul.f32 %v91, 0.01
    %v100 = vmul.f32 %v92, 0.01
    %v101 = vmul.f32 %v93, 0.01
    %v102 = vmul.f32 %v94, 0.01
    %v103 = vsel %vm95, %v91, %v99
    %v104 = vsel %vm96, %v92, %v100
    %v105 = vsel %vm97, %v93, %v101
    %v106 = vsel %vm98, %v94, %v102
    %107 = vst [vmem:[#allocation5] sm:$0xff] %v103
    %108 = vst [vmem:[#allocation5 + $0x8] sm:$0xff] %v104
    %109 = vst [vmem:[#allocation5 + $0x10] sm:$0xff] %v105
    %110 = vst [vmem:[#allocation5 + $0x18] sm:$0xff] %v106
    // Predicated region
    $region18: #{tpu_custom_call.1} parent=1 // pred_check
      _
    $region19: #{tpu_custom_call.1} parent=1 // pred_check_branch
      %112 = sbr.rel (0) target = $region21
    $region20: #{tpu_custom_call.1} parent=1 // pred_region
      %114 = vsyncadd [#allocation4], 0
      %s116 = sshll.u32 [#allocation5], 4
      %s117 = int_to_ptr.vmem [resolvable:$true] %s116
      %s118 = sshll.u32 %s3, 4
      %s119 = int_to_ptr.hbm [resolvable:$true] %s118
      %121 = dma.vmem_to_hbm [thread:$0]  %s117, 512, %s119, [#allocation4]
    $region21: #{tpu_custom_call.1} parent=1 // pred_fallthru
      _
    // Predicated region
    $region22: #{tpu_custom_call.1} parent=1 // pred_check
      _
    $region23: #{tpu_custom_call.1} parent=1 // pred_check_branch
      %123 = sbr.rel (0) target = $region25
    $region24: #{tpu_custom_call.1} parent=1 // pred_region
      %125 = dma.done [#allocation4], 512
    $region25: #{tpu_custom_call.1} parent=1 // pred_fallthru
      _
    %126 = vsyncpa [#allocation3], 1
    %127 = vsyncpa [#allocation4], 1

</llo_original>
